<compile_context>
chip_gen: v7x
topology: tpu7x:2x2x1
jax: 0.10.0
libtpu: 0.0.40
codegen_flags: <defaults>
</compile_context>

<pallas_src>
import jax
import jax.numpy as jnp
from jax.experimental import pallas as pl
from jax.experimental.pallas import tpu as pltpu


def _round_up(a, b):
    return (a + b - 1) // b * b


def _cdiv(a, b):
    return (a + b - 1) // b


def _physical_vmem_bytes():
    """Generation-aware physical VMEM (128 MiB on v5e/v6e, 64 MiB per TC on v7x)."""
    try:
        cap = getattr(pltpu.get_tpu_info(), "vmem_capacity_bytes", None)
        if cap:
            return int(cap)
    except Exception:
        pass
    return 64 << 20  # conservative fallback (v7x per-TensorCore)


def _largest_dividing_tile(total, cap, quantum):
    """Largest multiple of `quantum` that divides `total` and is <= cap."""
    best = quantum
    t = quantum
    while t <= min(cap, total):
        if total % t == 0:
            best = t
        t += quantum
    return best


# ----------------------------------------------------------------------------
# Kernels
# ----------------------------------------------------------------------------
def _ffn_resident_kernel(x_ref, w1_ref, b1_ref, w2_ref, b2_ref, o_ref):
    """Weights fully VMEM-resident; x/out streamed over the token grid."""
    # GEMM 1 on the MXU with f32 accumulation.
    h = jnp.dot(x_ref[...], w1_ref[...], preferred_element_type=jnp.float32)
    # Fused bias + ReLU + downcast: only one (TM, H) intermediate stays live.
    h = jnp.maximum(h + b1_ref[...], 0.0).astype(w2_ref.dtype)
    # GEMM 2 back to C, f32 accumulation; bias add in f32; cast only at store.
    y = jnp.dot(h, w2_ref[...], preferred_element_type=jnp.float32)
    o_ref[...] = (y + b2_ref[...]).astype(o_ref.dtype)
    # Dropout: eval-mode identity (see module TODO).


def _ffn_hsplit_kernel(x_ref, w1_ref, b1_ref, w2_ref, b2_ref, o_ref, acc_ref):
    """Hidden dim streamed over grid axis 1 ('arbitrary'); f32 (TM,C) accumulator."""
    h_idx = pl.program_id(1)

    @pl.when(h_idx == 0)
    def _():
        acc_ref[...] = jnp.zeros_like(acc_ref)

    h = jnp.dot(x_ref[...], w1_ref[...], preferred_element_type=jnp.float32)
    h = jnp.maximum(h + b1_ref[...], 0.0).astype(w2_ref.dtype)
    acc_ref[...] += jnp.dot(h, w2_ref[...], preferred_element_type=jnp.float32)

    @pl.when(h_idx == pl.num_programs(1) - 1)
    def _():
        o_ref[...] = (acc_ref[...] + b2_ref[...]).astype(o_ref.dtype)


# ----------------------------------------------------------------------------
# Host-side wrappers
# ----------------------------------------------------------------------------
def prepare_ffn_params(w1, b1, w2, b2, *, compute_dtype=jnp.bfloat16):
    """Cast weights to the MXU dtype and lane-pad C/H ONCE (hoisted out of the
    per-call path, so the forward pass runs no weight cast/pad HBM traffic)."""
    C, H = w1.shape
    assert w2.shape == (H, C), "w2 must be (hidden, n_embd)"
    C_pad = _round_up(C, 128)
    H_pad = _round_up(H, 128)

    w1c = w1.astype(compute_dtype)
    w2c = w2.astype(compute_dtype)
    b1f = jnp.reshape(b1, (1, H)).astype(jnp.float32)
    b2f = jnp.reshape(b2, (1, C)).astype(jnp.float32)
    if C_pad != C or H_pad != H:
        w1c = jnp.pad(w1c, ((0, C_pad - C), (0, H_pad - H)))
        w2c = jnp.pad(w2c, ((0, H_pad - H), (0, C_pad - C)))
        b1f = jnp.pad(b1f, ((0, 0), (0, H_pad - H)))
        b2f = jnp.pad(b2f, ((0, 0), (0, C_pad - C)))

    return {
        "w1": w1c, "b1": b1f, "w2": w2c, "b2": b2f,
        "n_embd": C, "hidden": H, "c_pad": C_pad, "h_pad": H_pad,
        "compute_dtype": compute_dtype,
    }


def feed_forward(x, params, *, tm=512, th=512, force_hidden_split=False):
    """x: (..., n_embd) -> same shape.  Eval-mode FeedForward forward pass."""
    C, H = params["n_embd"], params["hidden"]
    C_pad, H_pad = params["c_pad"], params["h_pad"]
    compute_dtype = params["compute_dtype"]
    w1, b1, w2, b2 = params["w1"], params["b1"], params["w2"], params["b2"]

    orig_shape = x.shape
    orig_dtype = x.dtype
    assert orig_shape[-1] == C

    x2d = x.reshape(-1, C)
    M = x2d.shape[0]

    # Token tile: multiple of 16 (bf16 sublane packing).  If the whole problem
    # would be a single grid step, split into >=2 tiles so v7x's two
    # TensorCores both get work on the "parallel" M axis.
    TM = min(tm, _round_up(M, 16))
    if TM > 16 and _cdiv(M, TM) < 2:
        TM = _round_up(_cdiv(M, 2), 16)
    M_pad = _round_up(M, TM)

    x_c = x2d.astype(compute_dtype)
    if M_pad != M or C_pad != C:
        x_c = jnp.pad(x_c, ((0, M_pad - M), (0, C_pad - C)))

    csize = jnp.dtype(compute_dtype).itemsize
    osize = jnp.dtype(orig_dtype).itemsize

    # Generation-aware VMEM ceiling: physical minus ~16 MiB compiler headroom.
    vmem_ceiling = max(_physical_vmem_bytes() - (16 << 20), 32 << 20)

    # Hidden tile for the streaming path: multiple of 128 that divides H_pad.
    TH = _largest_dividing_tile(H_pad, min(th, H_pad), 128)

    # --- VMEM accounting ------------------------------------------------------
    stream_bytes = 2 * TM * C_pad * (csize + osize)          # x/out double-buffered
    weight_bytes = 2 * C_pad * H_pad * csize + (H_pad + C_pad) * 4  # single-buffered
    resident_needed = (weight_bytes + stream_bytes
                       + TM * H_pad * (4 + csize)            # f32 h + bf16 h copy
                       + TM * C_pad * 4)                     # f32 epilogue temp
    hsplit_needed = (2 * (2 * C_pad * TH * csize + TH * 4)   # w1/w2/b1 slabs (2-buffered)
                     + C_pad * 4                             # b2
                     + stream_bytes
                     + TM * C_pad * 4                        # f32 accumulator scratch
                     + TM * TH * (4 + csize)                 # f32 h + bf16 h copy
                     + TM * C_pad * 4)                       # f32 partial product
    use_hsplit = force_hidden_split or (resident_needed > vmem_ceiling)

    needed = hsplit_needed if use_hsplit else resident_needed
    vmem_limit = min(max(int(needed * 1.25) + (4 << 20), 32 << 20), vmem_ceiling)

    m_tiles = M_pad // TM
    cost = pl.CostEstimate(
        flops=4 * M_pad * C_pad * H_pad,                     # two GEMMs: 2*M*K*N each
        transcendentals=0,
        bytes_accessed=(M_pad * C_pad * (csize + osize)
                        + 2 * C_pad * H_pad * csize * (m_tiles if use_hsplit else 1)
                        + (H_pad + C_pad) * 4),
    )

    if not use_hsplit:
        # Resident-weight path (v5e/v6e default; v7x when weights fit).
        out = pl.pallas_call(
            _ffn_resident_kernel,
            out_shape=jax.ShapeDtypeStruct((M_pad, C_pad), orig_dtype),
            grid=(m_tiles,),
            in_specs=[
                pl.BlockSpec((TM, C_pad), lambda i: (i, 0)),          # x streamed
                pl.BlockSpec(memory_space=pltpu.MemorySpace.VMEM),    # w1 resident (1 buf)
                pl.BlockSpec(memory_space=pltpu.MemorySpace.VMEM),    # b1 resident
                pl.BlockSpec(memory_space=pltpu.MemorySpace.VMEM),    # w2 resident (1 buf)
                pl.BlockSpec(memory_space=pltpu.MemorySpace.VMEM),    # b2 resident
            ],
            out_specs=pl.BlockSpec((TM, C_pad), lambda i: (i, 0)),
            compiler_params=pltpu.CompilerParams(
                dimension_semantics=("parallel",),
                vmem_limit_bytes=vmem_limit,
            ),
            cost_estimate=cost,
        )(x_c, w1, b1, w2, b2)
    else:
        # Hidden-dim streaming path (v7x / very wide models).
        h_tiles = H_pad // TH
        out = pl.pallas_call(
            _ffn_hsplit_kernel,
            out_shape=jax.ShapeDtypeStruct((M_pad, C_pad), orig_dtype),
            grid=(m_tiles, h_tiles),
            in_specs=[
                pl.BlockSpec((TM, C_pad), lambda i, h: (i, 0)),   # x (constant over h)
                pl.BlockSpec((C_pad, TH), lambda i, h: (0, h)),   # w1 slab streamed
                pl.BlockSpec((1, TH), lambda i, h: (0, h)),       # b1 slab streamed
                pl.BlockSpec((TH, C_pad), lambda i, h: (h, 0)),   # w2 slab streamed
                pl.BlockSpec((1, C_pad), lambda i, h: (0, 0)),    # b2
            ],
            out_specs=pl.BlockSpec((TM, C_pad), lambda i, h: (i, 0)),
            scratch_shapes=[pltpu.VMEM((TM, C_pad), jnp.float32)],
            compiler_params=pltpu.CompilerParams(
                dimension_semantics=("parallel", "arbitrary"),
                vmem_limit_bytes=vmem_limit,
            ),
            cost_estimate=cost,
        )(x_c, w1, b1, w2, b2)

    return out[:M, :C].reshape(orig_shape)


def init_params(key, n_embd, dtype=jnp.float32):
    """nn.Linear default init (U[-1/sqrt(fan_in), 1/sqrt(fan_in)]).
    Weights stored (in_features, out_features) so no transposes in the kernel."""
    hidden = 4 * n_embd
    k1, k2, k3, k4 = jax.random.split(key, 4)
    bound1 = 1.0 / jnp.sqrt(n_embd)
    bound2 = 1.0 / jnp.sqrt(hidden)
    w1 = jax.random.uniform(k1, (n_embd, hidden), dtype, -bound1, bound1)
    b1 = jax.random.uniform(k2, (1, hidden), dtype, -bound1, bound1)
    w2 = jax.random.uniform(k3, (hidden, n_embd), dtype, -bound2, bound2)
    b2 = jax.random.uniform(k4, (1, n_embd), dtype, -bound2, bound2)
    return w1, b1, w2, b2


def _ref_bf16(x, w1, b1, w2, b2):
    """Same bf16-operand / f32-accumulate math in pure JAX (tight tolerance)."""
    x2d = x.reshape(-1, x.shape[-1])
    h = jnp.dot(x2d.astype(jnp.bfloat16), w1.astype(jnp.bfloat16),
                preferred_element_type=jnp.float32) + b1.reshape(1, -1)
    h = jnp.maximum(h, 0.0)
    y = jnp.dot(h.astype(jnp.bfloat16), w2.astype(jnp.bfloat16),
                preferred_element_type=jnp.float32) + b2.reshape(1, -1)
    return y.reshape(x.shape)


def _ref_f32(x, w1, b1, w2, b2):
    x2d = x.reshape(-1, x.shape[-1])
    y = jnp.maximum(x2d @ w1 + b1.reshape(1, -1), 0.0) @ w2 + b2.reshape(1, -1)
    return y.reshape(x.shape)


if __name__ == "__main__":
    dropout_p = 0.1  # eval-mode forward: dropout is identity

    key = jax.random.PRNGKey(0)
    kx, kp, kx2, kp2 = jax.random.split(key, 4)

    # --- Test 1: small demo shape, resident-weight path ----------------------
    n_embd, B, T = 32, 2, 8
    x = jax.random.normal(kx, (B, T, n_embd), dtype=jnp.float32)
    w1, b1, w2, b2 = init_params(kp, n_embd)
    params = prepare_ffn_params(w1, b1, w2, b2)

    y = feed_forward(x, params)
    jax.block_until_ready(y)
    assert y.shape == (B, T, n_embd)
    assert jnp.allclose(y, _ref_bf16(x, w1, b1, w2, b2), atol=1e-4, rtol=1e-4)
    assert jnp.allclose(y, _ref_f32(x, w1, b1, w2, b2), atol=5e-2, rtol=5e-2)

    # --- Test 2: exercise the hidden-dim streaming (accumulator) path --------
    n_embd2, B2, T2 = 64, 2, 16
    x2 = jax.random.normal(kx2, (B2, T2, n_embd2), dtype=jnp.float32)
    w1b, b1b, w2b, b2b = init_params(kp2, n_embd2)
    params2 = prepare_ffn_params(w1b, b1b, w2b, b2b)

    y2 = feed_forward(x2, params2, th=128, force_hidden_split=True)
    jax.block_until_ready(y2)
    assert y2.shape == (B2, T2, n_embd2)
    assert jnp.allclose(y2, _ref_bf16(x2, w1b, b1b, w2b, b2b), atol=1e-4, rtol=1e-4)
    assert jnp.allclose(y2, _ref_f32(x2, w1b, b1b, w2b, b2b), atol=5e-2, rtol=5e-2)

    print("KERNEL_OK")
</pallas_src>

<mosaic_0001>
module attributes {stable_mosaic.version = 11 : i64} {
  func.func @_ffn_resident_kernel(%arg0: i32, %arg1: memref<16x128xbf16, #tpu.memory_space<vmem>>, %arg2: memref<128x128xbf16, #tpu.memory_space<vmem>>, %arg3: memref<1x128xf32, #tpu.memory_space<vmem>>, %arg4: memref<128x128xbf16, #tpu.memory_space<vmem>>, %arg5: memref<1x128xf32, #tpu.memory_space<vmem>>, %arg6: memref<16x128xf32, #tpu.memory_space<vmem>>) attributes {dimension_semantics = [#tpu.dimension_semantics<parallel>], iteration_bounds = array<i64: 1>, scalar_prefetch = 0 : i64, scratch_operands = 0 : i64, tpu.core_type = #tpu.core_type<tc>, window_params = [{transform_indices = @transform_0, window_bounds = array<i64: 16, 128>}, {pipeline_mode = #tpu.pipeline_mode<synchronous>, transform_indices = @transform_1, window_bounds = array<i64: 128, 128>}, {pipeline_mode = #tpu.pipeline_mode<synchronous>, transform_indices = @transform_2, window_bounds = array<i64: 1, 128>}, {pipeline_mode = #tpu.pipeline_mode<synchronous>, transform_indices = @transform_3, window_bounds = array<i64: 128, 128>}, {pipeline_mode = #tpu.pipeline_mode<synchronous>, transform_indices = @transform_4, window_bounds = array<i64: 1, 128>}, {transform_indices = @transform_5, window_bounds = array<i64: 16, 128>}]} {
    %c0 = arith.constant 0 : index
    %c0_0 = arith.constant 0 : index
    %0 = vector.load %arg1[%c0, %c0_0] : memref<16x128xbf16, #tpu.memory_space<vmem>>, vector<16x128xbf16>
    %c0_1 = arith.constant 0 : index
    %c0_2 = arith.constant 0 : index
    %1 = vector.load %arg2[%c0_1, %c0_2] : memref<128x128xbf16, #tpu.memory_space<vmem>>, vector<128x128xbf16>
    %cst = arith.constant dense<0.000000e+00> : vector<16x128xf32>
    %2 = tpu.matmul %0, %1, %cst {dimension_numbers = #tpu.dot_dimension_numbers<[1], [0], [0], [1], [0, 0, 1, 1], [], []>} : vector<16x128xbf16>, vector<128x128xbf16>, vector<16x128xf32> -> vector<16x128xf32>
    %c0_3 = arith.constant 0 : index
    %c0_4 = arith.constant 0 : index
    %3 = vector.load %arg3[%c0_3, %c0_4] : memref<1x128xf32, #tpu.memory_space<vmem>>, vector<1x128xf32>
    %4 = vector.broadcast %3 : vector<1x128xf32> to vector<16x128xf32>
    %5 = arith.addf %2, %4 : vector<16x128xf32>
    %cst_5 = arith.constant 0.000000e+00 : f32
    %6 = vector.broadcast %cst_5 : f32 to vector<16x128xf32>
    %7 = arith.maximumf %5, %6 : vector<16x128xf32>
    %8 = arith.truncf %7 : vector<16x128xf32> to vector<16x128xbf16>
    %c0_6 = arith.constant 0 : index
    %c0_7 = arith.constant 0 : index
    %9 = vector.load %arg4[%c0_6, %c0_7] : memref<128x128xbf16, #tpu.memory_space<vmem>>, vector<128x128xbf16>
    %cst_8 = arith.constant dense<0.000000e+00> : vector<16x128xf32>
    %10 = tpu.matmul %8, %9, %cst_8 {dimension_numbers = #tpu.dot_dimension_numbers<[1], [0], [0], [1], [0, 0, 1, 1], [], []>} : vector<16x128xbf16>, vector<128x128xbf16>, vector<16x128xf32> -> vector<16x128xf32>
    %c0_9 = arith.constant 0 : index
    %c0_10 = arith.constant 0 : index
    %11 = vector.load %arg5[%c0_9, %c0_10] : memref<1x128xf32, #tpu.memory_space<vmem>>, vector<1x128xf32>
    %12 = vector.broadcast %11 : vector<1x128xf32> to vector<16x128xf32>
    %13 = arith.addf %10, %12 : vector<16x128xf32>
    %c0_11 = arith.constant 0 : index
    %c0_12 = arith.constant 0 : index
    %14 = vector.load %arg6[%c0_11, %c0_12] : memref<16x128xf32, #tpu.memory_space<vmem>>, vector<16x128xf32>
    tpu.vector_store %arg6[%c0_11, %c0_12], %13 {strides = array<i32>} : memref<16x128xf32, #tpu.memory_space<vmem>>, vector<16x128xf32>,
    return
  }
  func.func @transform_0(%arg0: i32) -> (i32, i32) {
    %c0_i32 = arith.constant 0 : i32
    %c0_i32_0 = arith.constant 0 : i32
    return %arg0, %c0_i32 : i32, i32
  }
  func.func @transform_1(%arg0: i32) -> (i32, i32) {
    %c0_i32 = arith.constant 0 : i32
    %c0_i32_0 = arith.constant 0 : i32
    %c0_i32_1 = arith.constant 0 : i32
    return %c0_i32, %c0_i32_0 : i32, i32
  }
  func.func @transform_2(%arg0: i32) -> (i32, i32) {
    %c0_i32 = arith.constant 0 : i32
    %c0_i32_0 = arith.constant 0 : i32
    %c0_i32_1 = arith.constant 0 : i32
    return %c0_i32, %c0_i32_0 : i32, i32
  }
  func.func @transform_3(%arg0: i32) -> (i32, i32) {
    %c0_i32 = arith.constant 0 : i32
    %c0_i32_0 = arith.constant 0 : i32
    %c0_i32_1 = arith.constant 0 : i32
    return %c0_i32, %c0_i32_0 : i32, i32
  }
  func.func @transform_4(%arg0: i32) -> (i32, i32) {
    %c0_i32 = arith.constant 0 : i32
    %c0_i32_0 = arith.constant 0 : i32
    %c0_i32_1 = arith.constant 0 : i32
    return %c0_i32, %c0_i32_0 : i32, i32
  }
  func.func @transform_5(%arg0: i32) -> (i32, i32) {
    %c0_i32 = arith.constant 0 : i32
    %c0_i32_0 = arith.constant 0 : i32
    return %arg0, %c0_i32 : i32, i32
  }
}

</mosaic_0001>

<llo_original>
// kernel: tpu_custom_call.1
$region0: #{tpu_custom_call.1}
  #allocation0 [shape = 'u32[]', space=smem, size = 0x4, offset = 0x4, fixed_abs, tag = 'smem constant byte address 0x4 - core index']
  #allocation1 [shape = 'u32[144,128]{1,0:T(1,128)}', space=vmem, size = 0x12000, scoped, tag = 'internal scratch']
  %s0 = inlined_call_operand.hbm [shape: bf16[16,128], index: 0, kind: input, shape index: {}]
  %s1 = inlined_call_operand.hbm [shape: bf16[128,128], index: 1, kind: input, shape index: {}]
  %s2 = inlined_call_operand.vmem [shape: f32[1,128], index: 2, kind: input, shape index: {}]
  %s3 = inlined_call_operand.hbm [shape: bf16[128,128], index: 3, kind: input, shape index: {}]
  %s4 = inlined_call_operand.vmem [shape: f32[1,128], index: 4, kind: input, shape index: {}]
  %s5 = inlined_call_operand.hbm [shape: f32[16,128], index: 5, kind: output, shape index: {}]
  %s6 = sld [smem:[#allocation0]]
  $region42: #{tpu_custom_call.1} parent=0
    _
  %s8 = ssub.s32 1, %s6
  %s9 = scalar_select 0, %s8, %s6
  $region1: #{tpu_custom_call.1} parent=0
    #allocation2 [shape = 'u8[4096]{0}', space=vmem, size = 0x1000, scoped, tag = 'input window, operand 0, single buffered']
    #allocation3 [shape = 's32[1]{0}', space=sflag, size = 0x4, scoped, tag = 'scoped memory for tpu_custom_call.1']
    #allocation4 [shape = 's32[1]{0}', space=sflag, size = 0x4, scoped, tag = 'scoped memory for tpu_custom_call.1']
    #allocation5 [shape = 'u8[32768]{0}', space=vmem, size = 0x8000, scoped, tag = 'input window, operand 1, single buffered']
    #allocation6 [shape = 's32[1]{0}', space=sflag, size = 0x4, scoped, tag = 'scoped memory for tpu_custom_call.1']
    #allocation7 [shape = 'u8[32768]{0}', space=vmem, size = 0x8000, scoped, tag = 'input window, operand 3, single buffered']
    #allocation8 [shape = 'u8[8192]{0}', space=vmem, size = 0x2000, scoped, tag = 'output window, operand 0, single buffered']
    %10 = vsyncpa [#allocation3], 0
    %11 = vsyncpa [#allocation6], 0
    %12 = vsyncpa [#allocation4], 0
    // Predicated region
    $region2: #{tpu_custom_call.1} parent=1 // pred_check
      _
    $region3: #{tpu_custom_call.1} parent=1 // pred_check_branch
      %14 = sbr.rel (0) target = $region5
    $region4: #{tpu_custom_call.1} parent=1 // pred_region
      %s16 = ssub.s32 128, 128
      %17 = vsyncadd [#allocation3], %s16
      %s18 = sshll.u32 [#allocation2], 4
      %s19 = int_to_ptr.vmem [resolvable:$true] %s18
      %24 = dma.hbm_to_vmem [thread:$0]  %s0, 128, %s19, [#allocation3], 64, 64, 4
    $region5: #{tpu_custom_call.1} parent=1 // pred_fallthru
      _
    // Predicated region
    $region6: #{tpu_custom_call.1} parent=1 // pred_check
      _
    $region7: #{tpu_custom_call.1} parent=1 // pred_check_branch
      %26 = sbr.rel (0) target = $region9
    $region8: #{tpu_custom_call.1} parent=1 // pred_region
      %s28 = ssub.s32 1024, 1024
      %29 = vsyncadd [#allocation6], %s28
      %s30 = sshll.u32 [#allocation5], 4
      %s31 = int_to_ptr.vmem [resolvable:$true] %s30
      %36 = dma.hbm_to_vmem [thread:$0]  %s1, 1024, %s31, [#allocation6], 64, 64, 4
    $region9: #{tpu_custom_call.1} parent=1 // pred_fallthru
      _
    // Predicated region
    $region10: #{tpu_custom_call.1} parent=1 // pred_check
      _
    $region11: #{tpu_custom_call.1} parent=1 // pred_check_branch
      %38 = sbr.rel (0) target = $region13
    $region12: #{tpu_custom_call.1} parent=1 // pred_region
      _
    $region13: #{tpu_custom_call.1} parent=1 // pred_fallthru
      _
    // Predicated region
    $region14: #{tpu_custom_call.1} parent=1 // pred_check
      _
    $region15: #{tpu_custom_call.1} parent=1 // pred_check_branch
      %40 = sbr.rel (0) target = $region17
    $region16: #{tpu_custom_call.1} parent=1 // pred_region
      %s42 = ssub.s32 1024, 1024
      %43 = vsyncadd [#allocation6], %s42
      %s44 = sshll.u32 [#allocation7], 4
      %s45 = int_to_ptr.vmem [resolvable:$true] %s44
      %50 = dma.hbm_to_vmem [thread:$0]  %s3, 1024, %s45, [#allocation6], 64, 64, 4
    $region17: #{tpu_custom_call.1} parent=1 // pred_fallthru
      _
    // Predicated region
    $region18: #{tpu_custom_call.1} parent=1 // pred_check
      _
    $region19: #{tpu_custom_call.1} parent=1 // pred_check_branch
      %52 = sbr.rel (0) target = $region21
    $region20: #{tpu_custom_call.1} parent=1 // pred_region
      _
    $region21: #{tpu_custom_call.1} parent=1 // pred_fallthru
      _
    // Predicated region
    $region22: #{tpu_custom_call.1} parent=1 // pred_check
      _
    $region23: #{tpu_custom_call.1} parent=1 // pred_check_branch
      %54 = sbr.rel (0) target = $region25
    $region24: #{tpu_custom_call.1} parent=1 // pred_region
      %55 = dma.done [#allocation3], 128
    $region25: #{tpu_custom_call.1} parent=1 // pred_fallthru
      _
    // Predicated region
    $region26: #{tpu_custom_call.1} parent=1 // pred_check
      _
    $region27: #{tpu_custom_call.1} parent=1 // pred_check_branch
      %57 = sbr.rel (0) target = $region29
    $region28: #{tpu_custom_call.1} parent=1 // pred_region
      %58 = dma.done [#allocation6], 1024
    $region29: #{tpu_custom_call.1} parent=1 // pred_fallthru
      _
    // Predicated region
    $region30: #{tpu_custom_call.1} parent=1 // pred_check
      _
    $region31: #{tpu_custom_call.1} parent=1 // pred_check_branch
      %60 = sbr.rel (0) target = $region33
    $region32: #{tpu_custom_call.1} parent=1 // pred_region
      %61 = dma.done [#allocation6], 1024
    $region33: #{tpu_custom_call.1} parent=1 // pred_fallthru
      _
    %v63 = vld [vmem:[#allocation2] sm:$0xf]
    %v64 = vld [vmem:[#allocation2 + $0x4] sm:$0xf]
    %v65 = vld [vmem:[#allocation5] sm:$0xf]
    %v66 = vld [vmem:[#allocation5 + $0x4] sm:$0xf]
    %v67 = vld [vmem:[#allocation5 + $0x8] sm:$0xf]
    %v68 = vld [vmem:[#allocation5 + $0xc] sm:$0xf]
    %v69 = vld [vmem:[#allocation5 + $0x10] sm:$0xf]
    %v70 = vld [vmem:[#allocation5 + $0x14] sm:$0xf]
    %v71 = vld [vmem:[#allocation5 + $0x18] sm:$0xf]
    %v72 = vld [vmem:[#allocation5 + $0x1c] sm:$0xf]
    %v73 = vld [vmem:[#allocation5 + $0x20] sm:$0xf]
    %v74 = vld [vmem:[#allocation5 + $0x24] sm:$0xf]
    %v75 = vld [vmem:[#allocation5 + $0x28] sm:$0xf]
    %v76 = vld [vmem:[#allocation5 + $0x2c] sm:$0xf]
    %v77 = vld [vmem:[#allocation5 + $0x30] sm:$0xf]
    %v78 = vld [vmem:[#allocation5 + $0x34] sm:$0xf]
    %v79 = vld [vmem:[#allocation5 + $0x38] sm:$0xf]
    %v80 = vld [vmem:[#allocation5 + $0x3c] sm:$0xf]
    %v81 = vld [vmem:[%s2] sm:$0x1]
    %v83 = vlaneseq
    %v84 = vshrl.u32 %v83, 7
    %v85 = vsub.s32 0, %v84
    %v86 = vrot.slane %v81, %v85
    %v90 = vunpack.c.l.b16 %v63
    %v91 = vunpack.c.l.b16 %v64
    %v92 = vpack.c.b16 %v91, %v90
    %v110 = vunpack.c.l.b16 %v65
    %v111 = vunpack.c.l.b16 %v66
    %v112 = vunpack.c.l.b16 %v67
    %v113 = vunpack.c.l.b16 %v68
    %v114 = vunpack.c.l.b16 %v69
    %v115 = vunpack.c.l.b16 %v70
    %v116 = vunpack.c.l.b16 %v71
    %v117 = vunpack.c.l.b16 %v72
    %v118 = vunpack.c.l.b16 %v73
    %v119 = vunpack.c.l.b16 %v74
    %v120 = vunpack.c.l.b16 %v75
    %v121 = vunpack.c.l.b16 %v76
    %v122 = vunpack.c.l.b16 %v77
    %v123 = vunpack.c.l.b16 %v78
    %v124 = vunpack.c.l.b16 %v79
    %v125 = vunpack.c.l.b16 %v80
    %v126 = vpack.c.b16 %v111, %v110
    %v127 = vpack.c.b16 %v113, %v112
    %v128 = vpack.c.b16 %v115, %v114
    %v129 = vpack.c.b16 %v117, %v116
    %v130 = vpack.c.b16 %v119, %v118
    %v131 = vpack.c.b16 %v121, %v120
    %v132 = vpack.c.b16 %v123, %v122
    %v133 = vpack.c.b16 %v125, %v124
    %142 = vmatprep.subr.bf16.mxu0 0
    %143 = vmatpush1.bf16.msra.mxu0 %v126
    %144 = vmatprep.subr.bf16.mxu0 0
    %145 = vmatpush1.bf16.msra.mxu0 %v127
    %146 = vmatprep.subr.bf16.mxu0 0
    %147 = vmatpush1.bf16.msra.mxu0 %v128
    %148 = vmatprep.subr.bf16.mxu0 0
    %149 = vmatpush1.bf16.msra.mxu0 %v129
    %150 = vmatprep.subr.bf16.mxu0 0
    %151 = vmatpush1.bf16.msra.mxu0 %v130
    %152 = vmatprep.subr.bf16.mxu0 0
    %153 = vmatpush1.bf16.msra.mxu0 %v131
    %154 = vmatprep.subr.bf16.mxu0 0
    %155 = vmatpush1.bf16.msra.mxu0 %v132
    %156 = vmatprep.subr.bf16.mxu0 0
    %157 = vmatpush1.bf16.msra.mxu0 %v133
    %158 = vmatprep.subr.bf16.mxu0 0
    %159 = vmatpush1.bf16.msra.mxu0 0
    %160 = vmatprep.subr.bf16.mxu0 0
    %161 = vmatpush1.bf16.msra.mxu0 0
    %162 = vmatprep.subr.bf16.mxu0 0
    %163 = vmatpush1.bf16.msra.mxu0 0
    %164 = vmatprep.subr.bf16.mxu0 0
    %165 = vmatpush1.bf16.msra.mxu0 0
    %166 = vmatprep.subr.bf16.mxu0 0
    %167 = vmatpush1.bf16.msra.mxu0 0
    %168 = vmatprep.subr.bf16.mxu0 0
    %169 = vmatpush1.bf16.msra.mxu0 0
    %170 = vmatprep.subr.bf16.mxu0 0
    %171 = vmatpush1.bf16.msra.mxu0 0
    %172 = vmatprep.subr.bf16.mxu0 0
    %173 = vmatpush1.bf16.msra.mxu0 0
    %174 = vmatprep.mubr.bf16.mxu0 0
    %175 = vmatmul.mubr.bf16.gmra.mrb[0].mxu0 %v92
    %v176 = vpop.f32.mrb[0].mxu0
    %v177 = vadd.f32 %v86, %v176
    %v178 = vpop.f32.mrb[0].mxu0
    %v179 = vpop.f32.mrb[0].mxu0
    %v180 = vadd.f32 %v86, %v179
    %v181 = vpop.f32.mrb[0].mxu0
    %182 = vdwg.mxu0
    %v183 = vmax.f32 %v177, 0.0
    %v184 = vmax.f32 %v180, 0.0
    %v185 = vpack.c.bf16 %v184, %v183
    %v186 = vld [vmem:[#allocation7] sm:$0xf]
    %v187 = vld [vmem:[#allocation7 + $0x4] sm:$0xf]
    %v188 = vld [vmem:[#allocation7 + $0x8] sm:$0xf]
    %v189 = vld [vmem:[#allocation7 + $0xc] sm:$0xf]
    %v190 = vld [vmem:[#allocation7 + $0x10] sm:$0xf]
    %v191 = vld [vmem:[#allocation7 + $0x14] sm:$0xf]
    %v192 = vld [vmem:[#allocation7 + $0x18] sm:$0xf]
    %v193 = vld [vmem:[#allocation7 + $0x1c] sm:$0xf]
    %v194 = vld [vmem:[#allocation7 + $0x20] sm:$0xf]
    %v195 = vld [vmem:[#allocation7 + $0x24] sm:$0xf]
    %v196 = vld [vmem:[#allocation7 + $0x28] sm:$0xf]
    %v197 = vld [vmem:[#allocation7 + $0x2c] sm:$0xf]
    %v198 = vld [vmem:[#allocation7 + $0x30] sm:$0xf]
    %v199 = vld [vmem:[#allocation7 + $0x34] sm:$0xf]
    %v200 = vld [vmem:[#allocation7 + $0x38] sm:$0xf]
    %v201 = vld [vmem:[#allocation7 + $0x3c] sm:$0xf]
    %v202 = vld [vmem:[%s4] sm:$0x1]
    %v204 = vlaneseq
    %v205 = vshrl.u32 %v204, 7
    %v206 = vsub.s32 0, %v205
    %v207 = vrot.slane %v202, %v206
    %v225 = vunpack.c.l.b16 %v186
    %v226 = vunpack.c.l.b16 %v187
    %v227 = vunpack.c.l.b16 %v188
    %v228 = vunpack.c.l.b16 %v189
    %v229 = vunpack.c.l.b16 %v190
    %v230 = vunpack.c.l.b16 %v191
    %v231 = vunpack.c.l.b16 %v192
    %v232 = vunpack.c.l.b16 %v193
    %v233 = vunpack.c.l.b16 %v194
    %v234 = vunpack.c.l.b16 %v195
    %v235 = vunpack.c.l.b16 %v196
    %v236 = vunpack.c.l.b16 %v197
    %v237 = vunpack.c.l.b16 %v198
    %v238 = vunpack.c.l.b16 %v199
    %v239 = vunpack.c.l.b16 %v200
    %v240 = vunpack.c.l.b16 %v201
    %v241 = vpack.c.b16 %v226, %v225
    %v242 = vpack.c.b16 %v228, %v227
    %v243 = vpack.c.b16 %v230, %v229
    %v244 = vpack.c.b16 %v232, %v231
    %v245 = vpack.c.b16 %v234, %v233
    %v246 = vpack.c.b16 %v236, %v235
    %v247 = vpack.c.b16 %v238, %v237
    %v248 = vpack.c.b16 %v240, %v239
    %257 = vmatprep.subr.bf16.mxu0 0
    %258 = vmatpush1.bf16.msra.mxu0 %v241
    %259 = vmatprep.subr.bf16.mxu0 0
    %260 = vmatpush1.bf16.msra.mxu0 %v242
    %261 = vmatprep.subr.bf16.mxu0 0
    %262 = vmatpush1.bf16.msra.mxu0 %v243
    %263 = vmatprep.subr.bf16.mxu0 0
    %264 = vmatpush1.bf16.msra.mxu0 %v244
    %265 = vmatprep.subr.bf16.mxu0 0
    %266 = vmatpush1.bf16.msra.mxu0 %v245
    %267 = vmatprep.subr.bf16.mxu0 0
    %268 = vmatpush1.bf16.msra.mxu0 %v246
    %269 = vmatprep.subr.bf16.mxu0 0
    %270 = vmatpush1.bf16.msra.mxu0 %v247
    %271 = vmatprep.subr.bf16.mxu0 0
    %272 = vmatpush1.bf16.msra.mxu0 %v248
    %273 = vmatprep.subr.bf16.mxu0 0
    %274 = vmatpush1.bf16.msra.mxu0 0
    %275 = vmatprep.subr.bf16.mxu0 0
    %276 = vmatpush1.bf16.msra.mxu0 0
    %277 = vmatprep.subr.bf16.mxu0 0
    %278 = vmatpush1.bf16.msra.mxu0 0
    %279 = vmatprep.subr.bf16.mxu0 0
    %280 = vmatpush1.bf16.msra.mxu0 0
    %281 = vmatprep.subr.bf16.mxu0 0
    %282 = vmatpush1.bf16.msra.mxu0 0
    %283 = vmatprep.subr.bf16.mxu0 0
    %284 = vmatpush1.bf16.msra.mxu0 0
    %285 = vmatprep.subr.bf16.mxu0 0
    %286 = vmatpush1.bf16.msra.mxu0 0
    %287 = vmatprep.subr.bf16.mxu0 0
    %288 = vmatpush1.bf16.msra.mxu0 0
    %289 = vmatprep.mubr.bf16.mxu0 0
    %290 = vmatmul.mubr.bf16.gmra.mrb[0].mxu0 %v185
    %v291 = vpop.f32.mrb[0].mxu0
    %v292 = vadd.f32 %v207, %v291
    %v293 = vpop.f32.mrb[0].mxu0
    %v294 = vpop.f32.mrb[0].mxu0
    %v295 = vadd.f32 %v207, %v294
    %v296 = vpop.f32.mrb[0].mxu0
    %297 = vdwg.mxu0
    %298 = vst [vmem:[#allocation8] sm:$0xff] %v292
    %299 = vst [vmem:[#allocation8 + $0x8] sm:$0xff] %v295
    // Predicated region
    $region34: #{tpu_custom_call.1} parent=1 // pred_check
      _
    $region35: #{tpu_custom_call.1} parent=1 // pred_check_branch
      %301 = sbr.rel (0) target = $region37
    $region36: #{tpu_custom_call.1} parent=1 // pred_region
      %s303 = ssub.s32 256, 256
      %304 = vsyncadd [#allocation4], %s303
      %s305 = sshll.u32 [#allocation8], 4
      %s306 = int_to_ptr.vmem [resolvable:$true] %s305
      %311 = dma.vmem_to_hbm [thread:$0]  %s306, 256, %s5, [#allocation4], 128, 128, 8
    $region37: #{tpu_custom_call.1} parent=1 // pred_fallthru
      _
    // Predicated region
    $region38: #{tpu_custom_call.1} parent=1 // pred_check
      _
    $region39: #{tpu_custom_call.1} parent=1 // pred_check_branch
      %313 = sbr.rel (0) target = $region41
    $region40: #{tpu_custom_call.1} parent=1 // pred_region
      %314 = dma.done [#allocation4], 256
    $region41: #{tpu_custom_call.1} parent=1 // pred_fallthru
      _
    %315 = vsyncpa [#allocation3], 1
    %316 = vsyncpa [#allocation6], 1
    %317 = vsyncpa [#allocation4], 1

</llo_original>
